<compile_context>
chip_gen: v6e
topology: v6e:2x2x1
jax: 0.10.0
libtpu: 0.0.40
codegen_flags: <defaults>
</compile_context>

<pallas_src>
import math

import jax
import jax.numpy as jnp
import numpy as np
from jax.experimental import pallas as pl
from jax.experimental.pallas import tpu as pltpu

WINDOW_SIZE = 11
SIGMA = 1.5
C1 = 0.01 ** 2
C2 = 0.03 ** 2


# ----------------------------------------------------------------------------
# Constant construction (host-side numpy, matches SSIM.gaussian()/create_window).
# ----------------------------------------------------------------------------
def gaussian_1d(window_size, sigma):
    g = np.array(
        [math.exp(-((x - window_size // 2) ** 2) / float(2 * sigma ** 2))
         for x in range(window_size)],
        dtype=np.float64,
    )
    return g / g.sum()


def _toeplitz(n, g):
    """Banded matrix M with M[i, j] = g[j - i + pad] (zero-padded 'same' conv)."""
    K = len(g)
    pad = K // 2
    m = np.zeros((n, n), dtype=np.float64)
    for i in range(n):
        for k in range(K):
            j = i + k - pad
            if 0 <= j < n:
                m[i, j] = g[k]
    return m


def _block_diag(m, reps):
    n = m.shape[0]
    out = np.zeros((n * reps, n * reps), dtype=m.dtype)
    for r in range(reps):
        out[r * n:(r + 1) * n, r * n:(r + 1) * n] = m
    return out


# ----------------------------------------------------------------------------
# Generation-aware geometry.
# ----------------------------------------------------------------------------
def _tpu_geometry():
    """(mxu_width, lane_target, n_tensorcores, vmem_limit_bytes, batch_budget)."""
    kind = ""
    try:
        kind = jax.devices()[0].device_kind.lower()
    except Exception:
        pass
    if "v7" in kind:
        mxu, lane_target, n_tc, vmem_cap = 256, 256, 2, 64 << 20
    elif "v6" in kind:
        mxu, lane_target, n_tc, vmem_cap = 256, 256, 1, 128 << 20
    elif "v5 lite" in kind or "v5lite" in kind or "v5e" in kind:
        mxu, lane_target, n_tc, vmem_cap = 128, 128, 1, 128 << 20
    elif "v4" in kind or "v5" in kind:      # v4 / v5p (megacore: 2 TCs)
        mxu, lane_target, n_tc, vmem_cap = 128, 128, 2, 128 << 20
    else:                                    # unknown: be conservative
        mxu, lane_target, n_tc, vmem_cap = 128, 128, 1, 64 << 20
    try:
        cap = int(pltpu.get_tpu_info().vmem_capacity_bytes)
        if cap > 0:
            vmem_cap = cap
    except Exception:
        pass
    vmem_limit = (vmem_cap * 3) // 4         # headroom for Mosaic scratch
    batch_budget = vmem_limit // 4           # per-step working-set budget
    return mxu, lane_target, n_tc, vmem_limit, batch_budget


def _plan_lanes(nc, w, lane_target):
    """(P, nc_padded): planes packed side-by-side along lanes + zero-plane pad."""
    if w >= 128:
        return 1, nc
    max_p = max(1, lane_target // w)
    best_div = 1
    for p in range(1, min(nc, max_p) + 1):
        if nc % p == 0:
            best_div = p
    if best_div * w >= 128:
        return best_div, nc                  # lane-dense with real planes only
    # No divisor reaches a lane-dense (>=128) width: pad with zero planes.
    p = -(-128 // w)                         # ceil(128 / w)
    nc_pad = -(-nc // p) * p
    return p, nc_pad


def _pick_batch(g_groups, h, lw, max_rows, vmem_budget, min_blocks):
    """Packed groups per grid step (divisor of g_groups), legality-checked."""
    divisors = [b for b in range(1, g_groups + 1) if g_groups % b == 0]
    # Mosaic legality: a non-full block's second-minor dim must be 8-aligned.
    legal = [b for b in divisors
             if (g_groups // b == 1) or ((b * h) % 8 == 0)]

    def fits(b):
        rows = b * h
        # ~2x double-buffered x slabs + fused (5R,LW)/(R,5LW) temps + ssim map
        # + (conservatively) double-buffered Gv/Gw constants.
        ws = 26 * rows * lw * 4 + 2 * (rows * rows + lw * lw) * 4
        return rows <= max_rows and ws <= vmem_budget

    pool = [b for b in legal if fits(b)]
    if not pool:
        # Nothing fits the budget (e.g. huge H): smallest legal block.
        # TODO(synk): halo-tile H with banded factors instead of dense Toeplitz.
        return min(legal)
    pref = [b for b in pool if g_groups // b >= min_blocks]
    return max(pref) if pref else max(pool)


# ----------------------------------------------------------------------------
# Kernel
# ----------------------------------------------------------------------------
def _ssim_kernel(gv_ref, gw_ref, x1_ref, x2_ref, out_ref):
    gv = gv_ref[...]          # (R, R)   block-diag vertical gaussian factor
    gw = gw_ref[...]          # (LW, LW) block-diag horizontal gaussian factor
    x1 = x1_ref[...]          # (R, LW)  B*H rows of P lane-packed planes
    x2 = x2_ref[...]
    R, LW = x1.shape

    # Fused horizontal pass: one tall (5R, LW) @ (LW, LW) MXU matmul for
    # [x1, x2, x1*x2, x1*x1, x2*x2].
    stacked = jnp.concatenate([x1, x2, x1 * x2, x1 * x1, x2 * x2], axis=0)
    h = jnp.dot(stacked, gw, preferred_element_type=jnp.float32)     # (5R, LW)

    # Fused vertical pass: regroup the five results along lanes -> one wide
    # (R, R) @ (R, 5*LW) MXU matmul.
    hcat = jnp.concatenate([h[i * R:(i + 1) * R, :] for i in range(5)], axis=1)
    v = jnp.dot(gv, hcat, preferred_element_type=jnp.float32)        # (R, 5LW)

    mu1 = v[:, 0 * LW:1 * LW]
    mu2 = v[:, 1 * LW:2 * LW]
    g12 = v[:, 2 * LW:3 * LW]   # gconv(x1*x2)
    g11 = v[:, 3 * LW:4 * LW]   # gconv(x1*x1)
    g22 = v[:, 4 * LW:5 * LW]   # gconv(x2*x2)

    mm = mu1 * mu2                       # mu1*mu2
    ss = mu1 * mu1 + mu2 * mu2           # mu1^2 + mu2^2

    num = (2.0 * mm + C1) * (2.0 * (g12 - mm) + C2)
    den = (ss + C1) * (g11 + g22 - ss + C2)

    # EUP approx reciprocal + one Newton-Raphson step (keeps f32 accuracy while
    # moving the divide off the VALU).
    inv = pl.reciprocal(den, approx=True)
    inv = inv * (2.0 - den * inv)
    ssim_map = num * inv                 # (R, LW)

    # Balanced tree reduction of the per-row sums down to one 8-sublane slab.
    if R % 8 == 0:
        parts = [ssim_map[r:r + 8, :] for r in range(0, R, 8)]
        while len(parts) > 1:
            nxt = [parts[i] + parts[i + 1] for i in range(0, len(parts) - 1, 2)]
            if len(parts) % 2:
                nxt.append(parts[-1])
            parts = nxt
        part = parts[0]
    else:
        colsum = jnp.sum(ssim_map, axis=0, keepdims=True)
        part = jnp.concatenate(
            [colsum, jnp.zeros((7, LW), jnp.float32)], axis=0)

    out_ref[...] = part[None]            # lane-dense (1, 8, LW) partial sums


# ----------------------------------------------------------------------------
# Wrapper
# ----------------------------------------------------------------------------
def ssim_pallas(img1, img2, window_size=WINDOW_SIZE, size_average=True):
    assert size_average, "only size_average=True path implemented"
    img1 = img1.astype(jnp.float32)
    img2 = img2.astype(jnp.float32)
    N, C, H, W = img1.shape
    NC = N * C

    mxu, lane_target, n_tc, vmem_limit, batch_budget = _tpu_geometry()
    g = gaussian_1d(window_size, SIGMA)

    # Lane packing: P planes side by side (zero-pad planes only if needed).
    P, NC_pad = _plan_lanes(NC, W, lane_target)
    n_pad = NC_pad - NC
    G = NC_pad // P                # packed lane groups
    LW = P * W                     # lane width per block

    # Sublane packing: B groups stacked per grid step, R = B*H rows.
    min_blocks = min(n_tc, G)      # keep >=2 blocks on multi-TC chips
    B = _pick_batch(G, H, LW, max_rows=max(mxu, H),
                    vmem_budget=batch_budget, min_blocks=min_blocks)
    R = B * H
    num_blocks = G // B

    # Pre-baked gaussian Toeplitz factors (constants, VMEM-resident).
    tH = _toeplitz(H, g)                    # vertical factor  (left multiply)
    tW = _toeplitz(W, g).T                  # horizontal factor (right multiply)
    gv_blk = jnp.asarray(_block_diag(tH, B), jnp.float32)   # (R, R)
    gw_blk = jnp.asarray(_block_diag(tW, P), jnp.float32)   # (LW, LW)

    def prep(x):
        x = x.reshape(NC, H, W)
        if n_pad:
            x = jnp.concatenate(
                [x, jnp.zeros((n_pad, H, W), jnp.float32)], axis=0)
        if P > 1:
            # Pack P planes side-by-side along the lane axis (layout plumbing).
            x = x.reshape(G, P, H, W).transpose(0, 2, 1, 3).reshape(G, H, LW)
        return x.reshape(G * H, LW)

    x1 = prep(img1)
    x2 = prep(img2)

    def build(const_kwargs):
        in_specs = [
            pl.BlockSpec((R, R), lambda i: (0, 0), **const_kwargs),    # Gv
            pl.BlockSpec((LW, LW), lambda i: (0, 0), **const_kwargs),  # Gw
            pl.BlockSpec((R, LW), lambda i: (i, 0)),                   # img1 slab
            pl.BlockSpec((R, LW), lambda i: (i, 0)),                   # img2 slab
        ]
        return pl.pallas_call(
            _ssim_kernel,
            out_shape=jax.ShapeDtypeStruct((num_blocks, 8, LW), jnp.float32),
            grid=(num_blocks,),
            in_specs=in_specs,
            out_specs=pl.BlockSpec((1, 8, LW), lambda i: (i, 0, 0)),
            compiler_params=pltpu.CompilerParams(
                dimension_semantics=("parallel",),       # no cross-step deps
                vmem_limit_bytes=vmem_limit,
            ),
        )

    try:
        # Block-invariant Toeplitz factors: single-buffer (never re-fetched).
        partials = build(dict(pipeline_mode=pl.Buffered(buffer_count=1)))(
            gv_blk, gw_blk, x1, x2)
    except Exception:
        # JAX version without pipeline_mode/Buffered(1): default 2-deep buffers.
        partials = build({})(gv_blk, gw_blk, x1, x2)

    total = jnp.sum(partials)
    if n_pad:
        # Zero-padded planes yield ssim_map ~= 1 (num == den); subtract them.
        total = total - jnp.float32(n_pad * H * W)
    return total / jnp.float32(NC * H * W)


# ----------------------------------------------------------------------------
# Pure-JAX reference (mirrors the PyTorch _ssim grouped conv2d path).
# ----------------------------------------------------------------------------
def ssim_ref(img1, img2, window_size=WINDOW_SIZE):
    N, C, H, W = img1.shape
    g = jnp.asarray(gaussian_1d(window_size, SIGMA), jnp.float32)
    w2 = jnp.outer(g, g)
    window = jnp.broadcast_to(w2[None, None], (C, 1, window_size, window_size))
    pad = window_size // 2

    def conv(x):
        return jax.lax.conv_general_dilated(
            x, window, (1, 1), [(pad, pad), (pad, pad)],
            dimension_numbers=("NCHW", "OIHW", "NCHW"),
            feature_group_count=C,
        )

    mu1, mu2 = conv(img1), conv(img2)
    mu1_sq, mu2_sq, mu1_mu2 = mu1 * mu1, mu2 * mu2, mu1 * mu2
    s1 = conv(img1 * img1) - mu1_sq
    s2 = conv(img2 * img2) - mu2_sq
    s12 = conv(img1 * img2) - mu1_mu2
    m = ((2 * mu1_mu2 + C1) * (2 * s12 + C2)) / (
        (mu1_sq + mu2_sq + C1) * (s1 + s2 + C2)
    )
    return m.mean()


if __name__ == "__main__":
    key = jax.random.PRNGKey(0)
    k1, k2 = jax.random.split(key)
    N, C, H, W = 2, 4, 16, 16
    img1 = jax.random.uniform(k1, (N, C, H, W), dtype=jnp.float32)
    noise = 0.05 * jax.random.normal(k2, (N, C, H, W), dtype=jnp.float32)
    img2 = jnp.clip(img1 + noise, 0.0, 1.0)

    out = ssim_pallas(img1, img2)
    out = jax.block_until_ready(out)

    ref = ssim_ref(img1, img2)
    assert bool(jnp.isfinite(out)), "non-finite SSIM"
    assert abs(float(out) - float(ref)) < 1e-4, (float(out), float(ref))
    print("KERNEL_OK")
</pallas_src>

<mosaic_0001>
module attributes {stable_mosaic.version = 11 : i64} {
  func.func @_ssim_kernel(%arg0: i32, %arg1: memref<16x16xf32, #tpu.memory_space<vmem>>, %arg2: memref<128x128xf32, #tpu.memory_space<vmem>>, %arg3: memref<16x128xf32, #tpu.memory_space<vmem>>, %arg4: memref<16x128xf32, #tpu.memory_space<vmem>>, %arg5: memref<1x8x128xf32, #tpu.memory_space<vmem>>) attributes {dimension_semantics = [#tpu.dimension_semantics<parallel>], iteration_bounds = array<i64: 1>, scalar_prefetch = 0 : i64, scratch_operands = 0 : i64, tpu.core_type = #tpu.core_type<tc>, window_params = [{pipeline_mode = #tpu.pipeline_mode<synchronous>, transform_indices = @transform_0, window_bounds = array<i64: 16, 16>}, {pipeline_mode = #tpu.pipeline_mode<synchronous>, transform_indices = @transform_1, window_bounds = array<i64: 128, 128>}, {transform_indices = @transform_2, window_bounds = array<i64: 16, 128>}, {transform_indices = @transform_3, window_bounds = array<i64: 16, 128>}, {transform_indices = @transform_4, window_bounds = array<i64: 1, 8, 128>}]} {
    %c0 = arith.constant 0 : index
    %c0_0 = arith.constant 0 : index
    %0 = vector.load %arg1[%c0, %c0_0] : memref<16x16xf32, #tpu.memory_space<vmem>>, vector<16x16xf32>
    %c0_1 = arith.constant 0 : index
    %c0_2 = arith.constant 0 : index
    %1 = vector.load %arg2[%c0_1, %c0_2] : memref<128x128xf32, #tpu.memory_space<vmem>>, vector<128x128xf32>
    %c0_3 = arith.constant 0 : index
    %c0_4 = arith.constant 0 : index
    %2 = vector.load %arg3[%c0_3, %c0_4] : memref<16x128xf32, #tpu.memory_space<vmem>>, vector<16x128xf32>
    %c0_5 = arith.constant 0 : index
    %c0_6 = arith.constant 0 : index
    %3 = vector.load %arg4[%c0_5, %c0_6] : memref<16x128xf32, #tpu.memory_space<vmem>>, vector<16x128xf32>
    %4 = arith.mulf %2, %3 : vector<16x128xf32>
    %5 = arith.mulf %2, %2 : vector<16x128xf32>
    %6 = arith.mulf %3, %3 : vector<16x128xf32>
    %7 = tpu.concatenate %2, %3, %4, %5, %6 in 0 : vector<16x128xf32>, vector<16x128xf32>, vector<16x128xf32>, vector<16x128xf32>, vector<16x128xf32> -> vector<80x128xf32>
    %cst = arith.constant dense<0.000000e+00> : vector<80x128xf32>
    %8 = tpu.matmul %7, %1, %cst {dimension_numbers = #tpu.dot_dimension_numbers<[1], [0], [0], [1], [0, 0, 1, 1], [], []>} : vector<80x128xf32>, vector<128x128xf32>, vector<80x128xf32> -> vector<80x128xf32>
    %9 = vector.extract_strided_slice %8 {offsets = [0, 0], sizes = [16, 128], strides = [1, 1]} : vector<80x128xf32> to vector<16x128xf32>
    %10 = vector.extract_strided_slice %8 {offsets = [16, 0], sizes = [16, 128], strides = [1, 1]} : vector<80x128xf32> to vector<16x128xf32>
    %11 = vector.extract_strided_slice %8 {offsets = [32, 0], sizes = [16, 128], strides = [1, 1]} : vector<80x128xf32> to vector<16x128xf32>
    %12 = vector.extract_strided_slice %8 {offsets = [48, 0], sizes = [16, 128], strides = [1, 1]} : vector<80x128xf32> to vector<16x128xf32>
    %13 = vector.extract_strided_slice %8 {offsets = [64, 0], sizes = [16, 128], strides = [1, 1]} : vector<80x128xf32> to vector<16x128xf32>
    %14 = tpu.concatenate %9, %10, %11, %12, %13 in 1 : vector<16x128xf32>, vector<16x128xf32>, vector<16x128xf32>, vector<16x128xf32>, vector<16x128xf32> -> vector<16x640xf32>
    %cst_7 = arith.constant dense<0.000000e+00> : vector<16x640xf32>
    %15 = tpu.matmul %0, %14, %cst_7 {dimension_numbers = #tpu.dot_dimension_numbers<[1], [0], [0], [1], [0, 0, 1, 1], [], []>} : vector<16x16xf32>, vector<16x640xf32>, vector<16x640xf32> -> vector<16x640xf32>
    %16 = vector.extract_strided_slice %15 {offsets = [0, 0], sizes = [16, 128], strides = [1, 1]} : vector<16x640xf32> to vector<16x128xf32>
    %17 = vector.extract_strided_slice %15 {offsets = [0, 128], sizes = [16, 128], strides = [1, 1]} : vector<16x640xf32> to vector<16x128xf32>
    %18 = vector.extract_strided_slice %15 {offsets = [0, 256], sizes = [16, 128], strides = [1, 1]} : vector<16x640xf32> to vector<16x128xf32>
    %19 = vector.extract_strided_slice %15 {offsets = [0, 384], sizes = [16, 128], strides = [1, 1]} : vector<16x640xf32> to vector<16x128xf32>
    %20 = vector.extract_strided_slice %15 {offsets = [0, 512], sizes = [16, 128], strides = [1, 1]} : vector<16x640xf32> to vector<16x128xf32>
    %21 = arith.mulf %16, %17 : vector<16x128xf32>
    %22 = arith.mulf %16, %16 : vector<16x128xf32>
    %23 = arith.mulf %17, %17 : vector<16x128xf32>
    %24 = arith.addf %22, %23 : vector<16x128xf32>
    %cst_8 = arith.constant 2.000000e+00 : f32
    %25 = vector.broadcast %cst_8 : f32 to vector<16x128xf32>
    %26 = arith.mulf %25, %21 : vector<16x128xf32>
    %cst_9 = arith.constant 9.99999974E-5 : f32
    %27 = vector.broadcast %cst_9 : f32 to vector<16x128xf32>
    %28 = arith.addf %26, %27 : vector<16x128xf32>
    %29 = arith.subf %18, %21 : vector<16x128xf32>
    %cst_10 = arith.constant 2.000000e+00 : f32
    %30 = vector.broadcast %cst_10 : f32 to vector<16x128xf32>
    %31 = arith.mulf %30, %29 : vector<16x128xf32>
    %cst_11 = arith.constant 8.99999984E-4 : f32
    %32 = vector.broadcast %cst_11 : f32 to vector<16x128xf32>
    %33 = arith.addf %31, %32 : vector<16x128xf32>
    %34 = arith.mulf %28, %33 : vector<16x128xf32>
    %cst_12 = arith.constant 9.99999974E-5 : f32
    %35 = vector.broadcast %cst_12 : f32 to vector<16x128xf32>
    %36 = arith.addf %24, %35 : vector<16x128xf32>
    %37 = arith.addf %19, %20 : vector<16x128xf32>
    %38 = arith.subf %37, %24 : vector<16x128xf32>
    %cst_13 = arith.constant 8.99999984E-4 : f32
    %39 = vector.broadcast %cst_13 : f32 to vector<16x128xf32>
    %40 = arith.addf %38, %39 : vector<16x128xf32>
    %41 = arith.mulf %36, %40 : vector<16x128xf32>
    %42 = tpu.reciprocal %41 {approx = true} : vector<16x128xf32> -> vector<16x128xf32>
    %43 = arith.mulf %41, %42 : vector<16x128xf32>
    %cst_14 = arith.constant 2.000000e+00 : f32
    %44 = vector.broadcast %cst_14 : f32 to vector<16x128xf32>
    %45 = arith.subf %44, %43 : vector<16x128xf32>
    %46 = arith.mulf %42, %45 : vector<16x128xf32>
    %47 = arith.mulf %34, %46 : vector<16x128xf32>
    %48 = vector.extract_strided_slice %47 {offsets = [0, 0], sizes = [8, 128], strides = [1, 1]} : vector<16x128xf32> to vector<8x128xf32>
    %49 = vector.extract_strided_slice %47 {offsets = [8, 0], sizes = [8, 128], strides = [1, 1]} : vector<16x128xf32> to vector<8x128xf32>
    %50 = arith.addf %48, %49 : vector<8x128xf32>
    %51 = vector.shape_cast %50 : vector<8x128xf32> to vector<1x8x128xf32>
    %c0_15 = arith.constant 0 : index
    %c0_16 = arith.constant 0 : index
    %c0_17 = arith.constant 0 : index
    %52 = vector.load %arg5[%c0_15, %c0_16, %c0_17] : memref<1x8x128xf32, #tpu.memory_space<vmem>>, vector<1x8x128xf32>
    tpu.vector_store %arg5[%c0_15, %c0_16, %c0_17], %51 {strides = array<i32>} : memref<1x8x128xf32, #tpu.memory_space<vmem>>, vector<1x8x128xf32>,
    return
  }
  func.func @transform_0(%arg0: i32) -> (i32, i32) {
    %c0_i32 = arith.constant 0 : i32
    %c0_i32_0 = arith.constant 0 : i32
    %c0_i32_1 = arith.constant 0 : i32
    return %c0_i32, %c0_i32_0 : i32, i32
  }
  func.func @transform_1(%arg0: i32) -> (i32, i32) {
    %c0_i32 = arith.constant 0 : i32
    %c0_i32_0 = arith.constant 0 : i32
    %c0_i32_1 = arith.constant 0 : i32
    return %c0_i32, %c0_i32_0 : i32, i32
  }
  func.func @transform_2(%arg0: i32) -> (i32, i32) {
    %c0_i32 = arith.constant 0 : i32
    %c0_i32_0 = arith.constant 0 : i32
    return %arg0, %c0_i32 : i32, i32
  }
  func.func @transform_3(%arg0: i32) -> (i32, i32) {
    %c0_i32 = arith.constant 0 : i32
    %c0_i32_0 = arith.constant 0 : i32
    return %arg0, %c0_i32 : i32, i32
  }
  func.func @transform_4(%arg0: i32) -> (i32, i32, i32) {
    %c0_i32 = arith.constant 0 : i32
    %c0_i32_0 = arith.constant 0 : i32
    %c0_i32_1 = arith.constant 0 : i32
    return %arg0, %c0_i32, %c0_i32_0 : i32, i32, i32
  }
}

module attributes {stable_mosaic.version = 11 : i64} {
  func.func @_ssim_kernel(%arg0: i32, %arg1: memref<16x16xf32, #tpu.memory_space<vmem>>, %arg2: memref<128x128xf32, #tpu.memory_space<vmem>>, %arg3: memref<16x128xf32, #tpu.memory_space<vmem>>, %arg4: memref<16x128xf32, #tpu.memory_space<vmem>>, %arg5: memref<1x8x128xf32, #tpu.memory_space<vmem>>) attributes {dimension_semantics = [#tpu.dimension_semantics<parallel>], iteration_bounds = array<i64: 1>, scalar_prefetch = 0 : i64, scratch_operands = 0 : i64, tpu.core_type = #tpu.core_type<tc>, window_params = [{pipeline_mode = #tpu.pipeline_mode<synchronous>, transform_indices = @transform_0, window_bounds = array<i64: 16, 16>}, {pipeline_mode = #tpu.pipeline_mode<synchronous>, transform_indices = @transform_1, window_bounds = array<i64: 128, 128>}, {transform_indices = @transform_2, window_bounds = array<i64: 16, 128>}, {transform_indices = @transform_3, window_bounds = array<i64: 16, 128>}, {transform_indices = @transform_4, window_bounds = array<i64: 1, 8, 128>}]} {
    %c0 = arith.constant 0 : index
    %c0_0 = arith.constant 0 : index
    %0 = vector.load %arg1[%c0, %c0_0] : memref<16x16xf32, #tpu.memory_space<vmem>>, vector<16x16xf32>
    %c0_1 = arith.constant 0 : index
    %c0_2 = arith.constant 0 : index
    %1 = vector.load %arg2[%c0_1, %c0_2] : memref<128x128xf32, #tpu.memory_space<vmem>>, vector<128x128xf32>
    %c0_3 = arith.constant 0 : index
    %c0_4 = arith.constant 0 : index
    %2 = vector.load %arg3[%c0_3, %c0_4] : memref<16x128xf32, #tpu.memory_space<vmem>>, vector<16x128xf32>
    %c0_5 = arith.constant 0 : index
    %c0_6 = arith.constant 0 : index
    %3 = vector.load %arg4[%c0_5, %c0_6] : memref<16x128xf32, #tpu.memory_space<vmem>>, vector<16x128xf32>
    %4 = arith.mulf %2, %3 : vector<16x128xf32>
    %5 = arith.mulf %2, %2 : vector<16x128xf32>
    %6 = arith.mulf %3, %3 : vector<16x128xf32>
    %7 = tpu.concatenate %2, %3, %4, %5, %6 in 0 : vector<16x128xf32>, vector<16x128xf32>, vector<16x128xf32>, vector<16x128xf32>, vector<16x128xf32> -> vector<80x128xf32>
    %cst = arith.constant dense<0.000000e+00> : vector<80x128xf32>
    %8 = tpu.matmul %7, %1, %cst {dimension_numbers = #tpu.dot_dimension_numbers<[1], [0], [0], [1], [0, 0, 1, 1], [], []>} : vector<80x128xf32>, vector<128x128xf32>, vector<80x128xf32> -> vector<80x128xf32>
    %9 = vector.extract_strided_slice %8 {offsets = [0, 0], sizes = [16, 128], strides = [1, 1]} : vector<80x128xf32> to vector<16x128xf32>
    %10 = vector.extract_strided_slice %8 {offsets = [16, 0], sizes = [16, 128], strides = [1, 1]} : vector<80x128xf32> to vector<16x128xf32>
    %11 = vector.extract_strided_slice %8 {offsets = [32, 0], sizes = [16, 128], strides = [1, 1]} : vector<80x128xf32> to vector<16x128xf32>
    %12 = vector.extract_strided_slice %8 {offsets = [48, 0], sizes = [16, 128], strides = [1, 1]} : vector<80x128xf32> to vector<16x128xf32>
    %13 = vector.extract_strided_slice %8 {offsets = [64, 0], sizes = [16, 128], strides = [1, 1]} : vector<80x128xf32> to vector<16x128xf32>
    %14 = tpu.concatenate %9, %10, %11, %12, %13 in 1 : vector<16x128xf32>, vector<16x128xf32>, vector<16x128xf32>, vector<16x128xf32>, vector<16x128xf32> -> vector<16x640xf32>
    %cst_7 = arith.constant dense<0.000000e+00> : vector<16x640xf32>
    %15 = tpu.matmul %0, %14, %cst_7 {dimension_numbers = #tpu.dot_dimension_numbers<[1], [0], [0], [1], [0, 0, 1, 1], [], []>} : vector<16x16xf32>, vector<16x640xf32>, vector<16x640xf32> -> vector<16x640xf32>
    %16 = vector.extract_strided_slice %15 {offsets = [0, 0], sizes = [16, 128], strides = [1, 1]} : vector<16x640xf32> to vector<16x128xf32>
    %17 = vector.extract_strided_slice %15 {offsets = [0, 128], sizes = [16, 128], strides = [1, 1]} : vector<16x640xf32> to vector<16x128xf32>
    %18 = vector.extract_strided_slice %15 {offsets = [0, 256], sizes = [16, 128], strides = [1, 1]} : vector<16x640xf32> to vector<16x128xf32>
    %19 = vector.extract_strided_slice %15 {offsets = [0, 384], sizes = [16, 128], strides = [1, 1]} : vector<16x640xf32> to vector<16x128xf32>
    %20 = vector.extract_strided_slice %15 {offsets = [0, 512], sizes = [16, 128], strides = [1, 1]} : vector<16x640xf32> to vector<16x128xf32>
    %21 = arith.mulf %16, %17 : vector<16x128xf32>
    %22 = arith.mulf %16, %16 : vector<16x128xf32>
    %23 = arith.mulf %17, %17 : vector<16x128xf32>
    %24 = arith.addf %22, %23 : vector<16x128xf32>
    %cst_8 = arith.constant 2.000000e+00 : f32
    %25 = vector.broadcast %cst_8 : f32 to vector<16x128xf32>
    %26 = arith.mulf %25, %21 : vector<16x128xf32>
    %cst_9 = arith.constant 9.99999974E-5 : f32
    %27 = vector.broadcast %cst_9 : f32 to vector<16x128xf32>
    %28 = arith.addf %26, %27 : vector<16x128xf32>
    %29 = arith.subf %18, %21 : vector<16x128xf32>
    %cst_10 = arith.constant 2.000000e+00 : f32
    %30 = vector.broadcast %cst_10 : f32 to vector<16x128xf32>
    %31 = arith.mulf %30, %29 : vector<16x128xf32>
    %cst_11 = arith.constant 8.99999984E-4 : f32
    %32 = vector.broadcast %cst_11 : f32 to vector<16x128xf32>
    %33 = arith.addf %31, %32 : vector<16x128xf32>
    %34 = arith.mulf %28, %33 : vector<16x128xf32>
    %cst_12 = arith.constant 9.99999974E-5 : f32
    %35 = vector.broadcast %cst_12 : f32 to vector<16x128xf32>
    %36 = arith.addf %24, %35 : vector<16x128xf32>
    %37 = arith.addf %19, %20 : vector<16x128xf32>
    %38 = arith.subf %37, %24 : vector<16x128xf32>
    %cst_13 = arith.constant 8.99999984E-4 : f32
    %39 = vector.broadcast %cst_13 : f32 to vector<16x128xf32>
    %40 = arith.addf %38, %39 : vector<16x128xf32>
    %41 = arith.mulf %36, %40 : vector<16x128xf32>
    %42 = tpu.reciprocal %41 {approx = true} : vector<16x128xf32> -> vector<16x128xf32>
    %43 = arith.mulf %41, %42 : vector<16x128xf32>
    %cst_14 = arith.constant 2.000000e+00 : f32
    %44 = vector.broadcast %cst_14 : f32 to vector<16x128xf32>
    %45 = arith.subf %44, %43 : vector<16x128xf32>
    %46 = arith.mulf %42, %45 : vector<16x128xf32>
    %47 = arith.mulf %34, %46 : vector<16x128xf32>
    %48 = vector.extract_strided_slice %47 {offsets = [0, 0], sizes = [8, 128], strides = [1, 1]} : vector<16x128xf32> to vector<8x128xf32>
    %49 = vector.extract_strided_slice %47 {offsets = [8, 0], sizes = [8, 128], strides = [1, 1]} : vector<16x128xf32> to vector<8x128xf32>
    %50 = arith.addf %48, %49 : vector<8x128xf32>
    %51 = vector.shape_cast %50 : vector<8x128xf32> to vector<1x8x128xf32>
    %c0_15 = arith.constant 0 : index
    %c0_16 = arith.constant 0 : index
    %c0_17 = arith.constant 0 : index
    %52 = vector.load %arg5[%c0_15, %c0_16, %c0_17] : memref<1x8x128xf32, #tpu.memory_space<vmem>>, vector<1x8x128xf32>
    tpu.vector_store %arg5[%c0_15, %c0_16, %c0_17], %51 {strides = array<i32>} : memref<1x8x128xf32, #tpu.memory_space<vmem>>, vector<1x8x128xf32>,
    return
  }
  func.func @transform_0(%arg0: i32) -> (i32, i32) {
    %c0_i32 = arith.constant 0 : i32
    %c0_i32_0 = arith.constant 0 : i32
    %c0_i32_1 = arith.constant 0 : i32
    return %c0_i32, %c0_i32_0 : i32, i32
  }
  func.func @transform_1(%arg0: i32) -> (i32, i32) {
    %c0_i32 = arith.constant 0 : i32
    %c0_i32_0 = arith.constant 0 : i32
    %c0_i32_1 = arith.constant 0 : i32
    return %c0_i32, %c0_i32_0 : i32, i32
  }
  func.func @transform_2(%arg0: i32) -> (i32, i32) {
    %c0_i32 = arith.constant 0 : i32
    %c0_i32_0 = arith.constant 0 : i32
    return %arg0, %c0_i32 : i32, i32
  }
  func.func @transform_3(%arg0: i32) -> (i32, i32) {
    %c0_i32 = arith.constant 0 : i32
    %c0_i32_0 = arith.constant 0 : i32
    return %arg0, %c0_i32 : i32, i32
  }
  func.func @transform_4(%arg0: i32) -> (i32, i32, i32) {
    %c0_i32 = arith.constant 0 : i32
    %c0_i32_0 = arith.constant 0 : i32
    %c0_i32_1 = arith.constant 0 : i32
    return %arg0, %c0_i32, %c0_i32_0 : i32, i32, i32
  }
}

</mosaic_0001>

<llo_original>
// kernel: tpu_custom_call.1
$region0: #{tpu_custom_call.1}
  #allocation0 [shape = 'u32[]', space=smem, size = 0x4, offset = 0x4, fixed_abs, tag = 'smem constant byte address 0x4 - core index']
  #allocation1 [shape = 'u32[144,128]{1,0:T(1,128)}', space=vmem, size = 0x12000, scoped, tag = 'internal scratch']
  %s0 = inlined_call_operand.hbm [shape: f32[16,16], index: 0, kind: input, shape index: {}]
  %s1 = inlined_call_operand.hbm [shape: f32[128,128], index: 1, kind: input, shape index: {}]
  %s2 = inlined_call_operand.hbm [shape: f32[16,128], index: 2, kind: input, shape index: {}]
  %s3 = inlined_call_operand.hbm [shape: f32[16,128], index: 3, kind: input, shape index: {}]
  %s4 = inlined_call_operand.hbm [shape: f32[1,8,128], index: 4, kind: output, shape index: {}]
  %s5 = sld [smem:[#allocation0]]
  $region42: #{tpu_custom_call.1} parent=0
    _
  %s7 = ssub.s32 1, %s5
  %s8 = scalar_select 0, %s7, %s5
  $region1: #{tpu_custom_call.1} parent=0
    #allocation2 [shape = 'u8[8192]{0}', space=vmem, size = 0x2000, scoped, tag = 'input window, operand 0, single buffered']
    #allocation3 [shape = 's32[1]{0}', space=sflag, size = 0x4, scoped, tag = 'scoped memory for tpu_custom_call.1']
    #allocation4 [shape = 's32[1]{0}', space=sflag, size = 0x4, scoped, tag = 'scoped memory for tpu_custom_call.1']
    #allocation5 [shape = 'u8[65536]{0}', space=vmem, size = 0x10000, scoped, tag = 'input window, operand 1, single buffered']
    #allocation6 [shape = 's32[1]{0}', space=sflag, size = 0x4, scoped, tag = 'scoped memory for tpu_custom_call.1']
    #allocation7 [shape = 'u8[8192]{0}', space=vmem, size = 0x2000, scoped, tag = 'input window, operand 2, single buffered']
    #allocation8 [shape = 'u8[8192]{0}', space=vmem, size = 0x2000, scoped, tag = 'input window, operand 3, single buffered']
    #allocation9 [shape = 's32[1]{0}', space=sflag, size = 0x4, scoped, tag = 'scoped memory for tpu_custom_call.1']
    #allocation10 [shape = 'u8[4096]{0}', space=vmem, size = 0x1000, scoped, tag = 'output window, operand 0, single buffered']
    %9 = vsyncpa [#allocation3], 0
    %10 = vsyncpa [#allocation6], 0
    %11 = vsyncpa [#allocation9], 0
    %12 = vsyncpa [#allocation4], 0
    // Predicated region
    $region2: #{tpu_custom_call.1} parent=1 // pred_check
      _
    $region3: #{tpu_custom_call.1} parent=1 // pred_check_branch
      %14 = sbr.rel (0) target = $region5
    $region4: #{tpu_custom_call.1} parent=1 // pred_region
      %s16 = ssub.s32 256, 256
      %17 = vsyncadd [#allocation3], %s16
      %s18 = sshll.u32 [#allocation2], 4
      %s19 = int_to_ptr.vmem [resolvable:$true] %s18
      %24 = dma.hbm_to_vmem [thread:$0]  %s0, 256, %s19, [#allocation3], 128, 128, 8
    $region5: #{tpu_custom_call.1} parent=1 // pred_fallthru
      _
    // Predicated region
    $region6: #{tpu_custom_call.1} parent=1 // pred_check
      _
    $region7: #{tpu_custom_call.1} parent=1 // pred_check_branch
      %26 = sbr.rel (0) target = $region9
    $region8: #{tpu_custom_call.1} parent=1 // pred_region
      %s28 = ssub.s32 2048, 2048
      %29 = vsyncadd [#allocation6], %s28
      %s30 = sshll.u32 [#allocation5], 4
      %s31 = int_to_ptr.vmem [resolvable:$true] %s30
      %36 = dma.hbm_to_vmem [thread:$0]  %s1, 2048, %s31, [#allocation6], 128, 128, 8
    $region9: #{tpu_custom_call.1} parent=1 // pred_fallthru
      _
    // Predicated region
    $region10: #{tpu_custom_call.1} parent=1 // pred_check
      _
    $region11: #{tpu_custom_call.1} parent=1 // pred_check_branch
      %38 = sbr.rel (0) target = $region13
    $region12: #{tpu_custom_call.1} parent=1 // pred_region
      %s40 = ssub.s32 256, 256
      %41 = vsyncadd [#allocation6], %s40
      %s42 = sshll.u32 [#allocation7], 4
      %s43 = int_to_ptr.vmem [resolvable:$true] %s42
      %48 = dma.hbm_to_vmem [thread:$0]  %s2, 256, %s43, [#allocation6], 128, 128, 8
    $region13: #{tpu_custom_call.1} parent=1 // pred_fallthru
      _
    // Predicated region
    $region14: #{tpu_custom_call.1} parent=1 // pred_check
      _
    $region15: #{tpu_custom_call.1} parent=1 // pred_check_branch
      %50 = sbr.rel (0) target = $region17
    $region16: #{tpu_custom_call.1} parent=1 // pred_region
      %s52 = ssub.s32 256, 256
      %53 = vsyncadd [#allocation9], %s52
      %s54 = sshll.u32 [#allocation8], 4
      %s55 = int_to_ptr.vmem [resolvable:$true] %s54
      %60 = dma.hbm_to_vmem [thread:$0]  %s3, 256, %s55, [#allocation9], 128, 128, 8
    $region17: #{tpu_custom_call.1} parent=1 // pred_fallthru
      _
    // Predicated region
    $region18: #{tpu_custom_call.1} parent=1 // pred_check
      _
    $region19: #{tpu_custom_call.1} parent=1 // pred_check_branch
      %62 = sbr.rel (0) target = $region21
    $region20: #{tpu_custom_call.1} parent=1 // pred_region
      %63 = dma.done [#allocation3], 256
    $region21: #{tpu_custom_call.1} parent=1 // pred_fallthru
      _
    // Predicated region
    $region22: #{tpu_custom_call.1} parent=1 // pred_check
      _
    $region23: #{tpu_custom_call.1} parent=1 // pred_check_branch
      %65 = sbr.rel (0) target = $region25
    $region24: #{tpu_custom_call.1} parent=1 // pred_region
      %66 = dma.done [#allocation6], 2048
    $region25: #{tpu_custom_call.1} parent=1 // pred_fallthru
      _
    // Predicated region
    $region26: #{tpu_custom_call.1} parent=1 // pred_check
      _
    $region27: #{tpu_custom_call.1} parent=1 // pred_check_branch
      %68 = sbr.rel (0) target = $region29
    $region28: #{tpu_custom_call.1} parent=1 // pred_region
      %69 = dma.done [#allocation6], 256
    $region29: #{tpu_custom_call.1} parent=1 // pred_fallthru
      _
    // Predicated region
    $region30: #{tpu_custom_call.1} parent=1 // pred_check
      _
    $region31: #{tpu_custom_call.1} parent=1 // pred_check_branch
      %71 = sbr.rel (0) target = $region33
    $region32: #{tpu_custom_call.1} parent=1 // pred_region
      %72 = dma.done [#allocation9], 256
    $region33: #{tpu_custom_call.1} parent=1 // pred_fallthru
      _
    %v73 = vld [vmem:[#allocation2] sm:$0xff]
    %v74 = vld [vmem:[#allocation2 + $0x8] sm:$0xff]
    %v75 = vld [vmem:[#allocation5] sm:$0xff]
    %v76 = vld [vmem:[#allocation5 + $0x8] sm:$0xff]
    %v77 = vld [vmem:[#allocation5 + $0x10] sm:$0xff]
    %v78 = vld [vmem:[#allocation5 + $0x18] sm:$0xff]
    %v79 = vld [vmem:[#allocation5 + $0x20] sm:$0xff]
    %v80 = vld [vmem:[#allocation5 + $0x28] sm:$0xff]
    %v81 = vld [vmem:[#allocation5 + $0x30] sm:$0xff]
    %v82 = vld [vmem:[#allocation5 + $0x38] sm:$0xff]
    %v83 = vld [vmem:[#allocation5 + $0x40] sm:$0xff]
    %v84 = vld [vmem:[#allocation5 + $0x48] sm:$0xff]
    %v85 = vld [vmem:[#allocation5 + $0x50] sm:$0xff]
    %v86 = vld [vmem:[#allocation5 + $0x58] sm:$0xff]
    %v87 = vld [vmem:[#allocation5 + $0x60] sm:$0xff]
    %v88 = vld [vmem:[#allocation5 + $0x68] sm:$0xff]
    %v89 = vld [vmem:[#allocation5 + $0x70] sm:$0xff]
    %v90 = vld [vmem:[#allocation5 + $0x78] sm:$0xff]
    %v91 = vld [vmem:[#allocation7] sm:$0xff]
    %v92 = vld [vmem:[#allocation7 + $0x8] sm:$0xff]
    %v93 = vld [vmem:[#allocation8] sm:$0xff]
    %v94 = vld [vmem:[#allocation8 + $0x8] sm:$0xff]
    %v95 = vmul.f32 %v91, %v93
    %v96 = vmul.f32 %v92, %v94
    %v97 = vmul.f32 %v91, %v91
    %v98 = vmul.f32 %v92, %v92
    %v99 = vmul.f32 %v93, %v93
    %v100 = vmul.f32 %v94, %v94
    %101 = vmatprep.subr.mxu0 0.0
    %102 = vmatpush1.msra.mxu0 %v90
    %103 = vmatprep.subr.mxu0 0.0
    %104 = vmatpush1.msra.mxu0 %v89
    %105 = vmatprep.subr.mxu0 0.0
    %106 = vmatpush1.msra.mxu0 %v88
    %107 = vmatprep.subr.mxu0 0.0
    %108 = vmatpush1.msra.mxu0 %v87
    %109 = vmatprep.subr.mxu0 0.0
    %110 = vmatpush1.msra.mxu0 %v86
    %111 = vmatprep.subr.mxu0 0.0
    %112 = vmatpush1.msra.mxu0 %v85
    %113 = vmatprep.subr.mxu0 0.0
    %114 = vmatpush1.msra.mxu0 %v84
    %115 = vmatprep.subr.mxu0 0.0
    %116 = vmatpush1.msra.mxu0 %v83
    %117 = vmatprep.subr.mxu0 0.0
    %118 = vmatpush1.msra.mxu0 %v82
    %119 = vmatprep.subr.mxu0 0.0
    %120 = vmatpush1.msra.mxu0 %v81
    %121 = vmatprep.subr.mxu0 0.0
    %122 = vmatpush1.msra.mxu0 %v80
    %123 = vmatprep.subr.mxu0 0.0
    %124 = vmatpush1.msra.mxu0 %v79
    %125 = vmatprep.subr.mxu0 0.0
    %126 = vmatpush1.msra.mxu0 %v78
    %127 = vmatprep.subr.mxu0 0.0
    %128 = vmatpush1.msra.mxu0 %v77
    %129 = vmatprep.subr.mxu0 0.0
    %130 = vmatpush1.msra.mxu0 %v76
    %131 = vmatprep.subr.mxu0 0.0
    %132 = vmatpush1.msra.mxu0 %v75
    %133 = vmatprep.subr.mxu0 0.0
    %134 = vmatpush2.msra.mxu0 0.0
    %135 = vmatprep.subr.mxu0 0.0
    %136 = vmatpush2.msra.mxu0 0.0
    %137 = vmatprep.subr.mxu0 0.0
    %138 = vmatpush2.msra.mxu0 0.0
    %139 = vmatprep.subr.mxu0 0.0
    %140 = vmatpush2.msra.mxu0 0.0
    %141 = vmatprep.subr.mxu0 0.0
    %142 = vmatpush2.msra.mxu0 0.0
    %143 = vmatprep.subr.mxu0 0.0
    %144 = vmatpush2.msra.mxu0 0.0
    %145 = vmatprep.subr.mxu0 0.0
    %146 = vmatpush2.msra.mxu0 0.0
    %147 = vmatprep.subr.mxu0 0.0
    %148 = vmatpush2.msra.mxu0 0.0
    %149 = vmatprep.subr.mxu0 0.0
    %150 = vmatpush2.msra.mxu0 0.0
    %151 = vmatprep.subr.mxu0 0.0
    %152 = vmatpush2.msra.mxu0 0.0
    %153 = vmatprep.subr.mxu0 0.0
    %154 = vmatpush2.msra.mxu0 0.0
    %155 = vmatprep.subr.mxu0 0.0
    %156 = vmatpush2.msra.mxu0 0.0
    %157 = vmatprep.subr.mxu0 0.0
    %158 = vmatpush2.msra.mxu0 0.0
    %159 = vmatprep.subr.mxu0 0.0
    %160 = vmatpush2.msra.mxu0 0.0
    %161 = vmatprep.subr.mxu0 0.0
    %162 = vmatpush2.msra.mxu0 0.0
    %163 = vmatprep.subr.mxu0 0.0
    %164 = vmatpush2.msra.mxu0 0.0
    %165 = vmatprep.mubr.f32.mxu0 0.0
    %166 = vmatmul.mubr.f32.gmra.mxu0 %v91
    %v167 = vpop.f32.mrf.mxu0
    %v168 = vadd.f32 0.0, %v167
    %v169 = vpop.f32.mrf.mxu0
    %170 = vmatprep.mubr.f32.mxu0 0.0
    %171 = vmatmul.mubr.f32.gmra.mxu0 %v92
    %v172 = vpop.f32.mrf.mxu0
    %v173 = vadd.f32 0.0, %v172
    %v174 = vpop.f32.mrf.mxu0
    %175 = vmatprep.mubr.f32.mxu0 0.0
    %176 = vmatmul.mubr.f32.gmra.mxu0 %v93
    %v177 = vpop.f32.mrf.mxu0
    %v178 = vadd.f32 0.0, %v177
    %v179 = vpop.f32.mrf.mxu0
    %180 = vmatprep.mubr.f32.mxu0 0.0
    %181 = vmatmul.mubr.f32.gmra.mxu0 %v94
    %v182 = vpop.f32.mrf.mxu0
    %v183 = vadd.f32 0.0, %v182
    %v184 = vpop.f32.mrf.mxu0
    %185 = vmatprep.mubr.f32.mxu0 0.0
    %186 = vmatmul.mubr.f32.gmra.mxu0 %v95
    %v187 = vpop.f32.mrf.mxu0
    %v188 = vadd.f32 0.0, %v187
    %v189 = vpop.f32.mrf.mxu0
    %190 = vmatprep.mubr.f32.mxu0 0.0
    %191 = vmatmul.mubr.f32.gmra.mxu0 %v96
    %v192 = vpop.f32.mrf.mxu0
    %v193 = vadd.f32 0.0, %v192
    %v194 = vpop.f32.mrf.mxu0
    %195 = vmatprep.mubr.f32.mxu0 0.0
    %196 = vmatmul.mubr.f32.gmra.mxu0 %v97
    %v197 = vpop.f32.mrf.mxu0
    %v198 = vadd.f32 0.0, %v197
    %v199 = vpop.f32.mrf.mxu0
    %200 = vmatprep.mubr.f32.mxu0 0.0
    %201 = vmatmul.mubr.f32.gmra.mxu0 %v98
    %v202 = vpop.f32.mrf.mxu0
    %v203 = vadd.f32 0.0, %v202
    %v204 = vpop.f32.mrf.mxu0
    %205 = vmatprep.mubr.f32.mxu0 0.0
    %206 = vmatmul.mubr.f32.gmra.mxu0 %v99
    %v207 = vpop.f32.mrf.mxu0
    %v208 = vadd.f32 0.0, %v207
    %v209 = vpop.f32.mrf.mxu0
    %210 = vmatprep.mubr.f32.mxu0 0.0
    %211 = vmatmul.mubr.f32.gmra.mxu0 %v100
    %v212 = vpop.f32.mrf.mxu0
    %v213 = vadd.f32 0.0, %v212
    %v214 = vpop.f32.mrf.mxu0
    %215 = vdwg.mxu0
    %vm216 = vcmask 130048
    %v218 = vsel %vm216, %v73, 0
    %v221 = vsel %vm216, %v74, 0
    %223 = vmatprep.subr.mxu0 0.0
    %224 = vmatpush1.msra.mxu0 0.0
    %225 = vmatprep.subr.mxu0 0.0
    %226 = vmatpush1.msra.mxu0 0.0
    %227 = vmatprep.subr.mxu0 0.0
    %228 = vmatpush1.msra.mxu0 0.0
    %229 = vmatprep.subr.mxu0 0.0
    %230 = vmatpush1.msra.mxu0 0.0
    %231 = vmatprep.subr.mxu0 0.0
    %232 = vmatpush1.msra.mxu0 0.0
    %233 = vmatprep.subr.mxu0 0.0
    %234 = vmatpush1.msra.mxu0 0.0
    %235 = vmatprep.subr.mxu0 0.0
    %236 = vmatpush1.msra.mxu0 0.0
    %237 = vmatprep.subr.mxu0 0.0
    %238 = vmatpush1.msra.mxu0 0.0
    %239 = vmatprep.subr.mxu0 0.0
    %240 = vmatpush1.msra.mxu0 0.0
    %241 = vmatprep.subr.mxu0 0.0
    %242 = vmatpush1.msra.mxu0 0.0
    %243 = vmatprep.subr.mxu0 0.0
    %244 = vmatpush1.msra.mxu0 0.0
    %245 = vmatprep.subr.mxu0 0.0
    %246 = vmatpush1.msra.mxu0 0.0
    %247 = vmatprep.subr.mxu0 0.0
    %248 = vmatpush1.msra.mxu0 0.0
    %249 = vmatprep.subr.mxu0 0.0
    %250 = vmatpush1.msra.mxu0 0.0
    %251 = vmatprep.subr.mxu0 %v183
    %252 = vmatpush1.msra.mxu0 %v173
    %253 = vmatprep.subr.mxu0 %v178
    %254 = vmatpush1.msra.mxu0 %v168
    %255 = vmatprep.subr.mxu0 0.0
    %256 = vmatpush2.msra.mxu0 0.0
    %257 = vmatprep.subr.mxu0 0.0
    %258 = vmatpush2.msra.mxu0 0.0
    %259 = vmatprep.subr.mxu0 0.0
    %260 = vmatpush2.msra.mxu0 0.0
    %261 = vmatprep.subr.mxu0 0.0
    %262 = vmatpush2.msra.mxu0 0.0
    %263 = vmatprep.subr.mxu0 0.0
    %264 = vmatpush2.msra.mxu0 0.0
    %265 = vmatprep.subr.mxu0 0.0
    %266 = vmatpush2.msra.mxu0 0.0
    %267 = vmatprep.subr.mxu0 0.0
    %268 = vmatpush2.msra.mxu0 0.0
    %269 = vmatprep.subr.mxu0 0.0
    %270 = vmatpush2.msra.mxu0 0.0
    %271 = vmatprep.subr.mxu0 0.0
    %272 = vmatpush2.msra.mxu0 0.0
    %273 = vmatprep.subr.mxu0 0.0
    %274 = vmatpush2.msra.mxu0 0.0
    %275 = vmatprep.subr.mxu0 0.0
    %276 = vmatpush2.msra.mxu0 0.0
    %277 = vmatprep.subr.mxu0 0.0
    %278 = vmatpush2.msra.mxu0 0.0
    %279 = vmatprep.subr.mxu0 0.0
    %280 = vmatpush2.msra.mxu0 0.0
    %281 = vmatprep.subr.mxu0 0.0
    %282 = vmatpush2.msra.mxu0 0.0
    %283 = vmatprep.subr.mxu0 0.0
    %284 = vmatpush2.msra.mxu0 0.0
    %285 = vmatprep.subr.mxu0 0.0
    %286 = vmatpush2.msra.mxu0 0.0
    %287 = vmatprep.mubr.f32.mxu0 0.0
    %288 = vmatmul.mubr.f32.gmra.mxu0 %v218
    %v289 = vpop.f32.mrf.mxu0
    %v290 = vadd.f32 0.0, %v289
    %v291 = vpop.f32.mrf.mxu0
    %v292 = vadd.f32 0.0, %v291
    %293 = vmatprep.mubr.f32.mxu0 0.0
    %294 = vmatmul.mubr.f32.gmra.mxu0 %v221
    %v295 = vpop.f32.mrf.mxu0
    %v296 = vadd.f32 0.0, %v295
    %v297 = vpop.f32.mrf.mxu0
    %v298 = vadd.f32 0.0, %v297
    %299 = vdwg.mxu0
    %300 = vmatprep.subr.mxu0 0.0
    %301 = vmatpush1.msra.mxu0 0.0
    %302 = vmatprep.subr.mxu0 0.0
    %303 = vmatpush1.msra.mxu0 0.0
    %304 = vmatprep.subr.mxu0 0.0
    %305 = vmatpush1.msra.mxu0 0.0
    %306 = vmatprep.subr.mxu0 0.0
    %307 = vmatpush1.msra.mxu0 0.0
    %308 = vmatprep.subr.mxu0 0.0
    %309 = vmatpush1.msra.mxu0 0.0
    %310 = vmatprep.subr.mxu0 0.0
    %311 = vmatpush1.msra.mxu0 0.0
    %312 = vmatprep.subr.mxu0 0.0
    %313 = vmatpush1.msra.mxu0 0.0
    %314 = vmatprep.subr.mxu0 0.0
    %315 = vmatpush1.msra.mxu0 0.0
    %316 = vmatprep.subr.mxu0 0.0
    %317 = vmatpush1.msra.mxu0 0.0
    %318 = vmatprep.subr.mxu0 0.0
    %319 = vmatpush1.msra.mxu0 0.0
    %320 = vmatprep.subr.mxu0 0.0
    %321 = vmatpush1.msra.mxu0 0.0
    %322 = vmatprep.subr.mxu0 0.0
    %323 = vmatpush1.msra.mxu0 0.0
    %324 = vmatprep.subr.mxu0 0.0
    %325 = vmatpush1.msra.mxu0 0.0
    %326 = vmatprep.subr.mxu0 0.0
    %327 = vmatpush1.msra.mxu0 0.0
    %328 = vmatprep.subr.mxu0 %v203
    %329 = vmatpush1.msra.mxu0 %v193
    %330 = vmatprep.subr.mxu0 %v198
    %331 = vmatpush1.msra.mxu0 %v188
    %332 = vmatprep.subr.mxu0 0.0
    %333 = vmatpush2.msra.mxu0 0.0
    %334 = vmatprep.subr.mxu0 0.0
    %335 = vmatpush2.msra.mxu0 0.0
    %336 = vmatprep.subr.mxu0 0.0
    %337 = vmatpush2.msra.mxu0 0.0
    %338 = vmatprep.subr.mxu0 0.0
    %339 = vmatpush2.msra.mxu0 0.0
    %340 = vmatprep.subr.mxu0 0.0
    %341 = vmatpush2.msra.mxu0 0.0
    %342 = vmatprep.subr.mxu0 0.0
    %343 = vmatpush2.msra.mxu0 0.0
    %344 = vmatprep.subr.mxu0 0.0
    %345 = vmatpush2.msra.mxu0 0.0
    %346 = vmatprep.subr.mxu0 0.0
    %347 = vmatpush2.msra.mxu0 0.0
    %348 = vmatprep.subr.mxu0 0.0
    %349 = vmatpush2.msra.mxu0 0.0
    %350 = vmatprep.subr.mxu0 0.0
    %351 = vmatpush2.msra.mxu0 0.0
    %352 = vmatprep.subr.mxu0 0.0
    %353 = vmatpush2.msra.mxu0 0.0
    %354 = vmatprep.subr.mxu0 0.0
    %355 = vmatpush2.msra.mxu0 0.0
    %356 = vmatprep.subr.mxu0 0.0
    %357 = vmatpush2.msra.mxu0 0.0
    %358 = vmatprep.subr.mxu0 0.0
    %359 = vmatpush2.msra.mxu0 0.0
    %360 = vmatprep.subr.mxu0 0.0
    %361 = vmatpush2.msra.mxu0 0.0
    %362 = vmatprep.subr.mxu0 0.0
    %363 = vmatpush2.msra.mxu0 0.0
    %364 = vmatprep.mubr.f32.mxu0 0.0
    %365 = vmatmul.mubr.f32.gmra.mxu0 %v218
    %v366 = vpop.f32.mrf.mxu0
    %v367 = vadd.f32 0.0, %v366
    %v368 = vpop.f32.mrf.mxu0
    %v369 = vadd.f32 0.0, %v368
    %370 = vmatprep.mubr.f32.mxu0 0.0
    %371 = vmatmul.mubr.f32.gmra.mxu0 %v221
    %v372 = vpop.f32.mrf.mxu0
    %v373 = vadd.f32 0.0, %v372
    %v374 = vpop.f32.mrf.mxu0
    %v375 = vadd.f32 0.0, %v374
    %376 = vdwg.mxu0
    %377 = vmatprep.subr.mxu0 0.0
    %378 = vmatpush1.msra.mxu0 0.0
    %379 = vmatprep.subr.mxu0 0.0
    %380 = vmatpush1.msra.mxu0 0.0
    %381 = vmatprep.subr.mxu0 0.0
    %382 = vmatpush1.msra.mxu0 0.0
    %383 = vmatprep.subr.mxu0 0.0
    %384 = vmatpush1.msra.mxu0 0.0
    %385 = vmatprep.subr.mxu0 0.0
    %386 = vmatpush1.msra.mxu0 0.0
    %387 = vmatprep.subr.mxu0 0.0
    %388 = vmatpush1.msra.mxu0 0.0
    %389 = vmatprep.subr.mxu0 0.0
    %390 = vmatpush1.msra.mxu0 0.0
    %391 = vmatprep.subr.mxu0 0.0
    %392 = vmatpush1.msra.mxu0 0.0
    %393 = vmatprep.subr.mxu0 0.0
    %394 = vmatpush1.msra.mxu0 0.0
    %395 = vmatprep.subr.mxu0 0.0
    %396 = vmatpush1.msra.mxu0 0.0
    %397 = vmatprep.subr.mxu0 0.0
    %398 = vmatpush1.msra.mxu0 0.0
    %399 = vmatprep.subr.mxu0 0.0
    %400 = vmatpush1.msra.mxu0 0.0
    %401 = vmatprep.subr.mxu0 0.0
    %402 = vmatpush1.msra.mxu0 0.0
    %403 = vmatprep.subr.mxu0 0.0
    %404 = vmatpush1.msra.mxu0 0.0
    %405 = vmatprep.subr.mxu0 0.0
    %406 = vmatpush1.msra.mxu0 %v213
    %407 = vmatprep.subr.mxu0 0.0
    %408 = vmatpush1.msra.mxu0 %v208
    %409 = vmatprep.subr.mxu0 0.0
    %410 = vmatpush2.msra.mxu0 0.0
    %411 = vmatprep.subr.mxu0 0.0
    %412 = vmatpush2.msra.mxu0 0.0
    %413 = vmatprep.subr.mxu0 0.0
    %414 = vmatpush2.msra.mxu0 0.0
    %415 = vmatprep.subr.mxu0 0.0
    %416 = vmatpush2.msra.mxu0 0.0
    %417 = vmatprep.subr.mxu0 0.0
    %418 = vmatpush2.msra.mxu0 0.0
    %419 = vmatprep.subr.mxu0 0.0
    %420 = vmatpush2.msra.mxu0 0.0
    %421 = vmatprep.subr.mxu0 0.0
    %422 = vmatpush2.msra.mxu0 0.0
    %423 = vmatprep.subr.mxu0 0.0
    %424 = vmatpush2.msra.mxu0 0.0
    %425 = vmatprep.subr.mxu0 0.0
    %426 = vmatpush2.msra.mxu0 0.0
    %427 = vmatprep.subr.mxu0 0.0
    %428 = vmatpush2.msra.mxu0 0.0
    %429 = vmatprep.subr.mxu0 0.0
    %430 = vmatpush2.msra.mxu0 0.0
    %431 = vmatprep.subr.mxu0 0.0
    %432 = vmatpush2.msra.mxu0 0.0
    %433 = vmatprep.subr.mxu0 0.0
    %434 = vmatpush2.msra.mxu0 0.0
    %435 = vmatprep.subr.mxu0 0.0
    %436 = vmatpush2.msra.mxu0 0.0
    %437 = vmatprep.subr.mxu0 0.0
    %438 = vmatpush2.msra.mxu0 0.0
    %439 = vmatprep.subr.mxu0 0.0
    %440 = vmatpush2.msra.mxu0 0.0
    %441 = vmatprep.mubr.f32.mxu0 0.0
    %442 = vmatmul.mubr.f32.gmra.mxu0 %v218
    %v443 = vpop.f32.mrf.mxu0
    %v444 = vadd.f32 0.0, %v443
    %v445 = vpop.f32.mrf.mxu0
    %446 = vmatprep.mubr.f32.mxu0 0.0
    %447 = vmatmul.mubr.f32.gmra.mxu0 %v221
    %v448 = vpop.f32.mrf.mxu0
    %v449 = vadd.f32 0.0, %v448
    %v450 = vpop.f32.mrf.mxu0
    %451 = vdwg.mxu0
    %v452 = vmul.f32 %v290, %v292
    %v453 = vmul.f32 %v296, %v298
    %v454 = vmul.f32 %v290, %v290
    %v455 = vmul.f32 %v296, %v296
    %v456 = vmul.f32 %v292, %v292
    %v457 = vmul.f32 %v298, %v298
    %v458 = vadd.f32 %v454, %v456
    %v459 = vadd.f32 %v455, %v457
    %v460 = vmul.f32 %v452, 2.0
    %v461 = vmul.f32 %v453, 2.0
    %v462 = vadd.f32 %v460, 0.0001
    %v463 = vadd.f32 %v461, 0.0001
    %v464 = vsub.f32 %v367, %v452
    %v465 = vsub.f32 %v373, %v453
    %v466 = vmul.f32 %v464, 2.0
    %v467 = vmul.f32 %v465, 2.0
    %v468 = vadd.f32 %v466, 0.0009
    %v469 = vadd.f32 %v467, 0.0009
    %v470 = vmul.f32 %v462, %v468
    %v471 = vmul.f32 %v463, %v469
    %v472 = vadd.f32 %v458, 0.0001
    %v473 = vadd.f32 %v459, 0.0001
    %v474 = vadd.f32 %v369, %v444
    %v475 = vadd.f32 %v375, %v449
    %v476 = vsub.f32 %v474, %v458
    %v477 = vsub.f32 %v475, %v459
    %v478 = vadd.f32 %v476, 0.0009
    %v479 = vadd.f32 %v477, 0.0009
    %v480 = vmul.f32 %v472, %v478
    %v481 = vmul.f32 %v473, %v479
    %v482 = vrcp.pop %v480
    %v483 = vrcp.pop %v481
    %v484 = vmul.f32 %v480, %v482
    %v485 = vmul.f32 %v481, %v483
    %v486 = vsub.f32 2.0, %v484
    %v487 = vsub.f32 2.0, %v485
    %v488 = vmul.f32 %v482, %v486
    %v489 = vmul.f32 %v483, %v487
    %v490 = vmul.f32 %v470, %v488
    %v491 = vmul.f32 %v471, %v489
    %v492 = vadd.f32 %v490, %v491
    %493 = vst [vmem:[#allocation10] sm:$0xff] %v492
    // Predicated region
    $region34: #{tpu_custom_call.1} parent=1 // pred_check
      _
    $region35: #{tpu_custom_call.1} parent=1 // pred_check_branch
      %495 = sbr.rel (0) target = $region37
    $region36: #{tpu_custom_call.1} parent=1 // pred_region
      %s497 = ssub.s32 128, 128
      %498 = vsyncadd [#allocation4], %s497
      %s500 = sshll.u32 [#allocation10], 4
      %s501 = int_to_ptr.vmem [resolvable:$true] %s500
      %503 = dma.vmem_to_hbm [thread:$0]  %s501, 128, %s4, [#allocation4]
    $region37: #{tpu_custom_call.1} parent=1 // pred_fallthru
      _
    // Predicated region
    $region38: #{tpu_custom_call.1} parent=1 // pred_check
      _
    $region39: #{tpu_custom_call.1} parent=1 // pred_check_branch
      %505 = sbr.rel (0) target = $region41
    $region40: #{tpu_custom_call.1} parent=1 // pred_region
      %506 = dma.done [#allocation4], 128
    $region41: #{tpu_custom_call.1} parent=1 // pred_fallthru
      _
    %507 = vsyncpa [#allocation3], 1
    %508 = vsyncpa [#allocation6], 1
    %509 = vsyncpa [#allocation9], 1
    %510 = vsyncpa [#allocation4], 1

// kernel: tpu_custom_call.1
$region0: #{tpu_custom_call.1}
  #allocation0 [shape = 'u32[]', space=smem, size = 0x4, offset = 0x4, fixed_abs, tag = 'smem constant byte address 0x4 - core index']
  #allocation1 [shape = 'u32[144,128]{1,0:T(1,128)}', space=vmem, size = 0x12000, scoped, tag = 'internal scratch']
  %s0 = inlined_call_operand.hbm [shape: f32[16,16], index: 0, kind: input, shape index: {}]
  %s1 = inlined_call_operand.hbm [shape: f32[128,128], index: 1, kind: input, shape index: {}]
  %s2 = inlined_call_operand.hbm [shape: f32[16,128], index: 2, kind: input, shape index: {}]
  %s3 = inlined_call_operand.hbm [shape: f32[16,128], index: 3, kind: input, shape index: {}]
  %s4 = inlined_call_operand.hbm [shape: f32[1,8,128], index: 4, kind: output, shape index: {}]
  %s5 = sld [smem:[#allocation0]]
  $region42: #{tpu_custom_call.1} parent=0
    _
  %s7 = ssub.s32 1, %s5
  %s8 = scalar_select 0, %s7, %s5
  $region1: #{tpu_custom_call.1} parent=0
    #allocation2 [shape = 'u8[8192]{0}', space=vmem, size = 0x2000, scoped, tag = 'input window, operand 0, single buffered']
    #allocation3 [shape = 's32[1]{0}', space=sflag, size = 0x4, scoped, tag = 'scoped memory for tpu_custom_call.1']
    #allocation4 [shape = 's32[1]{0}', space=sflag, size = 0x4, scoped, tag = 'scoped memory for tpu_custom_call.1']
    #allocation5 [shape = 'u8[65536]{0}', space=vmem, size = 0x10000, scoped, tag = 'input window, operand 1, single buffered']
    #allocation6 [shape = 's32[1]{0}', space=sflag, size = 0x4, scoped, tag = 'scoped memory for tpu_custom_call.1']
    #allocation7 [shape = 'u8[8192]{0}', space=vmem, size = 0x2000, scoped, tag = 'input window, operand 2, single buffered']
    #allocation8 [shape = 'u8[8192]{0}', space=vmem, size = 0x2000, scoped, tag = 'input window, operand 3, single buffered']
    #allocation9 [shape = 's32[1]{0}', space=sflag, size = 0x4, scoped, tag = 'scoped memory for tpu_custom_call.1']
    #allocation10 [shape = 'u8[4096]{0}', space=vmem, size = 0x1000, scoped, tag = 'output window, operand 0, single buffered']
    %9 = vsyncpa [#allocation3], 0
    %10 = vsyncpa [#allocation6], 0
    %11 = vsyncpa [#allocation9], 0
    %12 = vsyncpa [#allocation4], 0
    // Predicated region
    $region2: #{tpu_custom_call.1} parent=1 // pred_check
      _
    $region3: #{tpu_custom_call.1} parent=1 // pred_check_branch
      %14 = sbr.rel (0) target = $region5
    $region4: #{tpu_custom_call.1} parent=1 // pred_region
      %s16 = ssub.s32 256, 256
      %17 = vsyncadd [#allocation3], %s16
      %s18 = sshll.u32 [#allocation2], 4
      %s19 = int_to_ptr.vmem [resolvable:$true] %s18
      %24 = dma.hbm_to_vmem [thread:$0]  %s0, 256, %s19, [#allocation3], 128, 128, 8
    $region5: #{tpu_custom_call.1} parent=1 // pred_fallthru
      _
    // Predicated region
    $region6: #{tpu_custom_call.1} parent=1 // pred_check
      _
    $region7: #{tpu_custom_call.1} parent=1 // pred_check_branch
      %26 = sbr.rel (0) target = $region9
    $region8: #{tpu_custom_call.1} parent=1 // pred_region
      %s28 = ssub.s32 2048, 2048
      %29 = vsyncadd [#allocation6], %s28
      %s30 = sshll.u32 [#allocation5], 4
      %s31 = int_to_ptr.vmem [resolvable:$true] %s30
      %36 = dma.hbm_to_vmem [thread:$0]  %s1, 2048, %s31, [#allocation6], 128, 128, 8
    $region9: #{tpu_custom_call.1} parent=1 // pred_fallthru
      _
    // Predicated region
    $region10: #{tpu_custom_call.1} parent=1 // pred_check
      _
    $region11: #{tpu_custom_call.1} parent=1 // pred_check_branch
      %38 = sbr.rel (0) target = $region13
    $region12: #{tpu_custom_call.1} parent=1 // pred_region
      %s40 = ssub.s32 256, 256
      %41 = vsyncadd [#allocation6], %s40
      %s42 = sshll.u32 [#allocation7], 4
      %s43 = int_to_ptr.vmem [resolvable:$true] %s42
      %48 = dma.hbm_to_vmem [thread:$0]  %s2, 256, %s43, [#allocation6], 128, 128, 8
    $region13: #{tpu_custom_call.1} parent=1 // pred_fallthru
      _
    // Predicated region
    $region14: #{tpu_custom_call.1} parent=1 // pred_check
      _
    $region15: #{tpu_custom_call.1} parent=1 // pred_check_branch
      %50 = sbr.rel (0) target = $region17
    $region16: #{tpu_custom_call.1} parent=1 // pred_region
      %s52 = ssub.s32 256, 256
      %53 = vsyncadd [#allocation9], %s52
      %s54 = sshll.u32 [#allocation8], 4
      %s55 = int_to_ptr.vmem [resolvable:$true] %s54
      %60 = dma.hbm_to_vmem [thread:$0]  %s3, 256, %s55, [#allocation9], 128, 128, 8
    $region17: #{tpu_custom_call.1} parent=1 // pred_fallthru
      _
    // Predicated region
    $region18: #{tpu_custom_call.1} parent=1 // pred_check
      _
    $region19: #{tpu_custom_call.1} parent=1 // pred_check_branch
      %62 = sbr.rel (0) target = $region21
    $region20: #{tpu_custom_call.1} parent=1 // pred_region
      %63 = dma.done [#allocation3], 256
    $region21: #{tpu_custom_call.1} parent=1 // pred_fallthru
      _
    // Predicated region
    $region22: #{tpu_custom_call.1} parent=1 // pred_check
      _
    $region23: #{tpu_custom_call.1} parent=1 // pred_check_branch
      %65 = sbr.rel (0) target = $region25
    $region24: #{tpu_custom_call.1} parent=1 // pred_region
      %66 = dma.done [#allocation6], 2048
    $region25: #{tpu_custom_call.1} parent=1 // pred_fallthru
      _
    // Predicated region
    $region26: #{tpu_custom_call.1} parent=1 // pred_check
      _
    $region27: #{tpu_custom_call.1} parent=1 // pred_check_branch
      %68 = sbr.rel (0) target = $region29
    $region28: #{tpu_custom_call.1} parent=1 // pred_region
      %69 = dma.done [#allocation6], 256
    $region29: #{tpu_custom_call.1} parent=1 // pred_fallthru
      _
    // Predicated region
    $region30: #{tpu_custom_call.1} parent=1 // pred_check
      _
    $region31: #{tpu_custom_call.1} parent=1 // pred_check_branch
      %71 = sbr.rel (0) target = $region33
    $region32: #{tpu_custom_call.1} parent=1 // pred_region
      %72 = dma.done [#allocation9], 256
    $region33: #{tpu_custom_call.1} parent=1 // pred_fallthru
      _
    %v73 = vld [vmem:[#allocation2] sm:$0xff]
    %v74 = vld [vmem:[#allocation2 + $0x8] sm:$0xff]
    %v75 = vld [vmem:[#allocation5] sm:$0xff]
    %v76 = vld [vmem:[#allocation5 + $0x8] sm:$0xff]
    %v77 = vld [vmem:[#allocation5 + $0x10] sm:$0xff]
    %v78 = vld [vmem:[#allocation5 + $0x18] sm:$0xff]
    %v79 = vld [vmem:[#allocation5 + $0x20] sm:$0xff]
    %v80 = vld [vmem:[#allocation5 + $0x28] sm:$0xff]
    %v81 = vld [vmem:[#allocation5 + $0x30] sm:$0xff]
    %v82 = vld [vmem:[#allocation5 + $0x38] sm:$0xff]
    %v83 = vld [vmem:[#allocation5 + $0x40] sm:$0xff]
    %v84 = vld [vmem:[#allocation5 + $0x48] sm:$0xff]
    %v85 = vld [vmem:[#allocation5 + $0x50] sm:$0xff]
    %v86 = vld [vmem:[#allocation5 + $0x58] sm:$0xff]
    %v87 = vld [vmem:[#allocation5 + $0x60] sm:$0xff]
    %v88 = vld [vmem:[#allocation5 + $0x68] sm:$0xff]
    %v89 = vld [vmem:[#allocation5 + $0x70] sm:$0xff]
    %v90 = vld [vmem:[#allocation5 + $0x78] sm:$0xff]
    %v91 = vld [vmem:[#allocation7] sm:$0xff]
    %v92 = vld [vmem:[#allocation7 + $0x8] sm:$0xff]
    %v93 = vld [vmem:[#allocation8] sm:$0xff]
    %v94 = vld [vmem:[#allocation8 + $0x8] sm:$0xff]
    %v95 = vmul.f32 %v91, %v93
    %v96 = vmul.f32 %v92, %v94
    %v97 = vmul.f32 %v91, %v91
    %v98 = vmul.f32 %v92, %v92
    %v99 = vmul.f32 %v93, %v93
    %v100 = vmul.f32 %v94, %v94
    %101 = vmatprep.subr.mxu0 0.0
    %102 = vmatpush1.msra.mxu0 %v90
    %103 = vmatprep.subr.mxu0 0.0
    %104 = vmatpush1.msra.mxu0 %v89
    %105 = vmatprep.subr.mxu0 0.0
    %106 = vmatpush1.msra.mxu0 %v88
    %107 = vmatprep.subr.mxu0 0.0
    %108 = vmatpush1.msra.mxu0 %v87
    %109 = vmatprep.subr.mxu0 0.0
    %110 = vmatpush1.msra.mxu0 %v86
    %111 = vmatprep.subr.mxu0 0.0
    %112 = vmatpush1.msra.mxu0 %v85
    %113 = vmatprep.subr.mxu0 0.0
    %114 = vmatpush1.msra.mxu0 %v84
    %115 = vmatprep.subr.mxu0 0.0
    %116 = vmatpush1.msra.mxu0 %v83
    %117 = vmatprep.subr.mxu0 0.0
    %118 = vmatpush1.msra.mxu0 %v82
    %119 = vmatprep.subr.mxu0 0.0
    %120 = vmatpush1.msra.mxu0 %v81
    %121 = vmatprep.subr.mxu0 0.0
    %122 = vmatpush1.msra.mxu0 %v80
    %123 = vmatprep.subr.mxu0 0.0
    %124 = vmatpush1.msra.mxu0 %v79
    %125 = vmatprep.subr.mxu0 0.0
    %126 = vmatpush1.msra.mxu0 %v78
    %127 = vmatprep.subr.mxu0 0.0
    %128 = vmatpush1.msra.mxu0 %v77
    %129 = vmatprep.subr.mxu0 0.0
    %130 = vmatpush1.msra.mxu0 %v76
    %131 = vmatprep.subr.mxu0 0.0
    %132 = vmatpush1.msra.mxu0 %v75
    %133 = vmatprep.subr.mxu0 0.0
    %134 = vmatpush2.msra.mxu0 0.0
    %135 = vmatprep.subr.mxu0 0.0
    %136 = vmatpush2.msra.mxu0 0.0
    %137 = vmatprep.subr.mxu0 0.0
    %138 = vmatpush2.msra.mxu0 0.0
    %139 = vmatprep.subr.mxu0 0.0
    %140 = vmatpush2.msra.mxu0 0.0
    %141 = vmatprep.subr.mxu0 0.0
    %142 = vmatpush2.msra.mxu0 0.0
    %143 = vmatprep.subr.mxu0 0.0
    %144 = vmatpush2.msra.mxu0 0.0
    %145 = vmatprep.subr.mxu0 0.0
    %146 = vmatpush2.msra.mxu0 0.0
    %147 = vmatprep.subr.mxu0 0.0
    %148 = vmatpush2.msra.mxu0 0.0
    %149 = vmatprep.subr.mxu0 0.0
    %150 = vmatpush2.msra.mxu0 0.0
    %151 = vmatprep.subr.mxu0 0.0
    %152 = vmatpush2.msra.mxu0 0.0
    %153 = vmatprep.subr.mxu0 0.0
    %154 = vmatpush2.msra.mxu0 0.0
    %155 = vmatprep.subr.mxu0 0.0
    %156 = vmatpush2.msra.mxu0 0.0
    %157 = vmatprep.subr.mxu0 0.0
    %158 = vmatpush2.msra.mxu0 0.0
    %159 = vmatprep.subr.mxu0 0.0
    %160 = vmatpush2.msra.mxu0 0.0
    %161 = vmatprep.subr.mxu0 0.0
    %162 = vmatpush2.msra.mxu0 0.0
    %163 = vmatprep.subr.mxu0 0.0
    %164 = vmatpush2.msra.mxu0 0.0
    %165 = vmatprep.mubr.f32.mxu0 0.0
    %166 = vmatmul.mubr.f32.gmra.mxu0 %v91
    %v167 = vpop.f32.mrf.mxu0
    %v168 = vadd.f32 0.0, %v167
    %v169 = vpop.f32.mrf.mxu0
    %170 = vmatprep.mubr.f32.mxu0 0.0
    %171 = vmatmul.mubr.f32.gmra.mxu0 %v92
    %v172 = vpop.f32.mrf.mxu0
    %v173 = vadd.f32 0.0, %v172
    %v174 = vpop.f32.mrf.mxu0
    %175 = vmatprep.mubr.f32.mxu0 0.0
    %176 = vmatmul.mubr.f32.gmra.mxu0 %v93
    %v177 = vpop.f32.mrf.mxu0
    %v178 = vadd.f32 0.0, %v177
    %v179 = vpop.f32.mrf.mxu0
    %180 = vmatprep.mubr.f32.mxu0 0.0
    %181 = vmatmul.mubr.f32.gmra.mxu0 %v94
    %v182 = vpop.f32.mrf.mxu0
    %v183 = vadd.f32 0.0, %v182
    %v184 = vpop.f32.mrf.mxu0
    %185 = vmatprep.mubr.f32.mxu0 0.0
    %186 = vmatmul.mubr.f32.gmra.mxu0 %v95
    %v187 = vpop.f32.mrf.mxu0
    %v188 = vadd.f32 0.0, %v187
    %v189 = vpop.f32.mrf.mxu0
    %190 = vmatprep.mubr.f32.mxu0 0.0
    %191 = vmatmul.mubr.f32.gmra.mxu0 %v96
    %v192 = vpop.f32.mrf.mxu0
    %v193 = vadd.f32 0.0, %v192
    %v194 = vpop.f32.mrf.mxu0
    %195 = vmatprep.mubr.f32.mxu0 0.0
    %196 = vmatmul.mubr.f32.gmra.mxu0 %v97
    %v197 = vpop.f32.mrf.mxu0
    %v198 = vadd.f32 0.0, %v197
    %v199 = vpop.f32.mrf.mxu0
    %200 = vmatprep.mubr.f32.mxu0 0.0
    %201 = vmatmul.mubr.f32.gmra.mxu0 %v98
    %v202 = vpop.f32.mrf.mxu0
    %v203 = vadd.f32 0.0, %v202
    %v204 = vpop.f32.mrf.mxu0
    %205 = vmatprep.mubr.f32.mxu0 0.0
    %206 = vmatmul.mubr.f32.gmra.mxu0 %v99
    %v207 = vpop.f32.mrf.mxu0
    %v208 = vadd.f32 0.0, %v207
    %v209 = vpop.f32.mrf.mxu0
    %210 = vmatprep.mubr.f32.mxu0 0.0
    %211 = vmatmul.mubr.f32.gmra.mxu0 %v100
    %v212 = vpop.f32.mrf.mxu0
    %v213 = vadd.f32 0.0, %v212
    %v214 = vpop.f32.mrf.mxu0
    %215 = vdwg.mxu0
    %vm216 = vcmask 130048
    %v218 = vsel %vm216, %v73, 0
    %v221 = vsel %vm216, %v74, 0
    %223 = vmatprep.subr.mxu0 0.0
    %224 = vmatpush1.msra.mxu0 0.0
    %225 = vmatprep.subr.mxu0 0.0
    %226 = vmatpush1.msra.mxu0 0.0
    %227 = vmatprep.subr.mxu0 0.0
    %228 = vmatpush1.msra.mxu0 0.0
    %229 = vmatprep.subr.mxu0 0.0
    %230 = vmatpush1.msra.mxu0 0.0
    %231 = vmatprep.subr.mxu0 0.0
    %232 = vmatpush1.msra.mxu0 0.0
    %233 = vmatprep.subr.mxu0 0.0
    %234 = vmatpush1.msra.mxu0 0.0
    %235 = vmatprep.subr.mxu0 0.0
    %236 = vmatpush1.msra.mxu0 0.0
    %237 = vmatprep.subr.mxu0 0.0
    %238 = vmatpush1.msra.mxu0 0.0
    %239 = vmatprep.subr.mxu0 0.0
    %240 = vmatpush1.msra.mxu0 0.0
    %241 = vmatprep.subr.mxu0 0.0
    %242 = vmatpush1.msra.mxu0 0.0
    %243 = vmatprep.subr.mxu0 0.0
    %244 = vmatpush1.msra.mxu0 0.0
    %245 = vmatprep.subr.mxu0 0.0
    %246 = vmatpush1.msra.mxu0 0.0
    %247 = vmatprep.subr.mxu0 0.0
    %248 = vmatpush1.msra.mxu0 0.0
    %249 = vmatprep.subr.mxu0 0.0
    %250 = vmatpush1.msra.mxu0 0.0
    %251 = vmatprep.subr.mxu0 %v183
    %252 = vmatpush1.msra.mxu0 %v173
    %253 = vmatprep.subr.mxu0 %v178
    %254 = vmatpush1.msra.mxu0 %v168
    %255 = vmatprep.subr.mxu0 0.0
    %256 = vmatpush2.msra.mxu0 0.0
    %257 = vmatprep.subr.mxu0 0.0
    %258 = vmatpush2.msra.mxu0 0.0
    %259 = vmatprep.subr.mxu0 0.0
    %260 = vmatpush2.msra.mxu0 0.0
    %261 = vmatprep.subr.mxu0 0.0
    %262 = vmatpush2.msra.mxu0 0.0
    %263 = vmatprep.subr.mxu0 0.0
    %264 = vmatpush2.msra.mxu0 0.0
    %265 = vmatprep.subr.mxu0 0.0
    %266 = vmatpush2.msra.mxu0 0.0
    %267 = vmatprep.subr.mxu0 0.0
    %268 = vmatpush2.msra.mxu0 0.0
    %269 = vmatprep.subr.mxu0 0.0
    %270 = vmatpush2.msra.mxu0 0.0
    %271 = vmatprep.subr.mxu0 0.0
    %272 = vmatpush2.msra.mxu0 0.0
    %273 = vmatprep.subr.mxu0 0.0
    %274 = vmatpush2.msra.mxu0 0.0
    %275 = vmatprep.subr.mxu0 0.0
    %276 = vmatpush2.msra.mxu0 0.0
    %277 = vmatprep.subr.mxu0 0.0
    %278 = vmatpush2.msra.mxu0 0.0
    %279 = vmatprep.subr.mxu0 0.0
    %280 = vmatpush2.msra.mxu0 0.0
    %281 = vmatprep.subr.mxu0 0.0
    %282 = vmatpush2.msra.mxu0 0.0
    %283 = vmatprep.subr.mxu0 0.0
    %284 = vmatpush2.msra.mxu0 0.0
    %285 = vmatprep.subr.mxu0 0.0
    %286 = vmatpush2.msra.mxu0 0.0
    %287 = vmatprep.mubr.f32.mxu0 0.0
    %288 = vmatmul.mubr.f32.gmra.mxu0 %v218
    %v289 = vpop.f32.mrf.mxu0
    %v290 = vadd.f32 0.0, %v289
    %v291 = vpop.f32.mrf.mxu0
    %v292 = vadd.f32 0.0, %v291
    %293 = vmatprep.mubr.f32.mxu0 0.0
    %294 = vmatmul.mubr.f32.gmra.mxu0 %v221
    %v295 = vpop.f32.mrf.mxu0
    %v296 = vadd.f32 0.0, %v295
    %v297 = vpop.f32.mrf.mxu0
    %v298 = vadd.f32 0.0, %v297
    %299 = vdwg.mxu0
    %300 = vmatprep.subr.mxu0 0.0
    %301 = vmatpush1.msra.mxu0 0.0
    %302 = vmatprep.subr.mxu0 0.0
    %303 = vmatpush1.msra.mxu0 0.0
    %304 = vmatprep.subr.mxu0 0.0
    %305 = vmatpush1.msra.mxu0 0.0
    %306 = vmatprep.subr.mxu0 0.0
    %307 = vmatpush1.msra.mxu0 0.0
    %308 = vmatprep.subr.mxu0 0.0
    %309 = vmatpush1.msra.mxu0 0.0
    %310 = vmatprep.subr.mxu0 0.0
    %311 = vmatpush1.msra.mxu0 0.0
    %312 = vmatprep.subr.mxu0 0.0
    %313 = vmatpush1.msra.mxu0 0.0
    %314 = vmatprep.subr.mxu0 0.0
    %315 = vmatpush1.msra.mxu0 0.0
    %316 = vmatprep.subr.mxu0 0.0
    %317 = vmatpush1.msra.mxu0 0.0
    %318 = vmatprep.subr.mxu0 0.0
    %319 = vmatpush1.msra.mxu0 0.0
    %320 = vmatprep.subr.mxu0 0.0
    %321 = vmatpush1.msra.mxu0 0.0
    %322 = vmatprep.subr.mxu0 0.0
    %323 = vmatpush1.msra.mxu0 0.0
    %324 = vmatprep.subr.mxu0 0.0
    %325 = vmatpush1.msra.mxu0 0.0
    %326 = vmatprep.subr.mxu0 0.0
    %327 = vmatpush1.msra.mxu0 0.0
    %328 = vmatprep.subr.mxu0 %v203
    %329 = vmatpush1.msra.mxu0 %v193
    %330 = vmatprep.subr.mxu0 %v198
    %331 = vmatpush1.msra.mxu0 %v188
    %332 = vmatprep.subr.mxu0 0.0
    %333 = vmatpush2.msra.mxu0 0.0
    %334 = vmatprep.subr.mxu0 0.0
    %335 = vmatpush2.msra.mxu0 0.0
    %336 = vmatprep.subr.mxu0 0.0
    %337 = vmatpush2.msra.mxu0 0.0
    %338 = vmatprep.subr.mxu0 0.0
    %339 = vmatpush2.msra.mxu0 0.0
    %340 = vmatprep.subr.mxu0 0.0
    %341 = vmatpush2.msra.mxu0 0.0
    %342 = vmatprep.subr.mxu0 0.0
    %343 = vmatpush2.msra.mxu0 0.0
    %344 = vmatprep.subr.mxu0 0.0
    %345 = vmatpush2.msra.mxu0 0.0
    %346 = vmatprep.subr.mxu0 0.0
    %347 = vmatpush2.msra.mxu0 0.0
    %348 = vmatprep.subr.mxu0 0.0
    %349 = vmatpush2.msra.mxu0 0.0
    %350 = vmatprep.subr.mxu0 0.0
    %351 = vmatpush2.msra.mxu0 0.0
    %352 = vmatprep.subr.mxu0 0.0
    %353 = vmatpush2.msra.mxu0 0.0
    %354 = vmatprep.subr.mxu0 0.0
    %355 = vmatpush2.msra.mxu0 0.0
    %356 = vmatprep.subr.mxu0 0.0
    %357 = vmatpush2.msra.mxu0 0.0
    %358 = vmatprep.subr.mxu0 0.0
    %359 = vmatpush2.msra.mxu0 0.0
    %360 = vmatprep.subr.mxu0 0.0
    %361 = vmatpush2.msra.mxu0 0.0
    %362 = vmatprep.subr.mxu0 0.0
    %363 = vmatpush2.msra.mxu0 0.0
    %364 = vmatprep.mubr.f32.mxu0 0.0
    %365 = vmatmul.mubr.f32.gmra.mxu0 %v218
    %v366 = vpop.f32.mrf.mxu0
    %v367 = vadd.f32 0.0, %v366
    %v368 = vpop.f32.mrf.mxu0
    %v369 = vadd.f32 0.0, %v368
    %370 = vmatprep.mubr.f32.mxu0 0.0
    %371 = vmatmul.mubr.f32.gmra.mxu0 %v221
    %v372 = vpop.f32.mrf.mxu0
    %v373 = vadd.f32 0.0, %v372
    %v374 = vpop.f32.mrf.mxu0
    %v375 = vadd.f32 0.0, %v374
    %376 = vdwg.mxu0
    %377 = vmatprep.subr.mxu0 0.0
    %378 = vmatpush1.msra.mxu0 0.0
    %379 = vmatprep.subr.mxu0 0.0
    %380 = vmatpush1.msra.mxu0 0.0
    %381 = vmatprep.subr.mxu0 0.0
    %382 = vmatpush1.msra.mxu0 0.0
    %383 = vmatprep.subr.mxu0 0.0
    %384 = vmatpush1.msra.mxu0 0.0
    %385 = vmatprep.subr.mxu0 0.0
    %386 = vmatpush1.msra.mxu0 0.0
    %387 = vmatprep.subr.mxu0 0.0
    %388 = vmatpush1.msra.mxu0 0.0
    %389 = vmatprep.subr.mxu0 0.0
    %390 = vmatpush1.msra.mxu0 0.0
    %391 = vmatprep.subr.mxu0 0.0
    %392 = vmatpush1.msra.mxu0 0.0
    %393 = vmatprep.subr.mxu0 0.0
    %394 = vmatpush1.msra.mxu0 0.0
    %395 = vmatprep.subr.mxu0 0.0
    %396 = vmatpush1.msra.mxu0 0.0
    %397 = vmatprep.subr.mxu0 0.0
    %398 = vmatpush1.msra.mxu0 0.0
    %399 = vmatprep.subr.mxu0 0.0
    %400 = vmatpush1.msra.mxu0 0.0
    %401 = vmatprep.subr.mxu0 0.0
    %402 = vmatpush1.msra.mxu0 0.0
    %403 = vmatprep.subr.mxu0 0.0
    %404 = vmatpush1.msra.mxu0 0.0
    %405 = vmatprep.subr.mxu0 0.0
    %406 = vmatpush1.msra.mxu0 %v213
    %407 = vmatprep.subr.mxu0 0.0
    %408 = vmatpush1.msra.mxu0 %v208
    %409 = vmatprep.subr.mxu0 0.0
    %410 = vmatpush2.msra.mxu0 0.0
    %411 = vmatprep.subr.mxu0 0.0
    %412 = vmatpush2.msra.mxu0 0.0
    %413 = vmatprep.subr.mxu0 0.0
    %414 = vmatpush2.msra.mxu0 0.0
    %415 = vmatprep.subr.mxu0 0.0
    %416 = vmatpush2.msra.mxu0 0.0
    %417 = vmatprep.subr.mxu0 0.0
    %418 = vmatpush2.msra.mxu0 0.0
    %419 = vmatprep.subr.mxu0 0.0
    %420 = vmatpush2.msra.mxu0 0.0
    %421 = vmatprep.subr.mxu0 0.0
    %422 = vmatpush2.msra.mxu0 0.0
    %423 = vmatprep.subr.mxu0 0.0
    %424 = vmatpush2.msra.mxu0 0.0
    %425 = vmatprep.subr.mxu0 0.0
    %426 = vmatpush2.msra.mxu0 0.0
    %427 = vmatprep.subr.mxu0 0.0
    %428 = vmatpush2.msra.mxu0 0.0
    %429 = vmatprep.subr.mxu0 0.0
    %430 = vmatpush2.msra.mxu0 0.0
    %431 = vmatprep.subr.mxu0 0.0
    %432 = vmatpush2.msra.mxu0 0.0
    %433 = vmatprep.subr.mxu0 0.0
    %434 = vmatpush2.msra.mxu0 0.0
    %435 = vmatprep.subr.mxu0 0.0
    %436 = vmatpush2.msra.mxu0 0.0
    %437 = vmatprep.subr.mxu0 0.0
    %438 = vmatpush2.msra.mxu0 0.0
    %439 = vmatprep.subr.mxu0 0.0
    %440 = vmatpush2.msra.mxu0 0.0
    %441 = vmatprep.mubr.f32.mxu0 0.0
    %442 = vmatmul.mubr.f32.gmra.mxu0 %v218
    %v443 = vpop.f32.mrf.mxu0
    %v444 = vadd.f32 0.0, %v443
    %v445 = vpop.f32.mrf.mxu0
    %446 = vmatprep.mubr.f32.mxu0 0.0
    %447 = vmatmul.mubr.f32.gmra.mxu0 %v221
    %v448 = vpop.f32.mrf.mxu0
    %v449 = vadd.f32 0.0, %v448
    %v450 = vpop.f32.mrf.mxu0
    %451 = vdwg.mxu0
    %v452 = vmul.f32 %v290, %v292
    %v453 = vmul.f32 %v296, %v298
    %v454 = vmul.f32 %v290, %v290
    %v455 = vmul.f32 %v296, %v296
    %v456 = vmul.f32 %v292, %v292
    %v457 = vmul.f32 %v298, %v298
    %v458 = vadd.f32 %v454, %v456
    %v459 = vadd.f32 %v455, %v457
    %v460 = vmul.f32 %v452, 2.0
    %v461 = vmul.f32 %v453, 2.0
    %v462 = vadd.f32 %v460, 0.0001
    %v463 = vadd.f32 %v461, 0.0001
    %v464 = vsub.f32 %v367, %v452
    %v465 = vsub.f32 %v373, %v453
    %v466 = vmul.f32 %v464, 2.0
    %v467 = vmul.f32 %v465, 2.0
    %v468 = vadd.f32 %v466, 0.0009
    %v469 = vadd.f32 %v467, 0.0009
    %v470 = vmul.f32 %v462, %v468
    %v471 = vmul.f32 %v463, %v469
    %v472 = vadd.f32 %v458, 0.0001
    %v473 = vadd.f32 %v459, 0.0001
    %v474 = vadd.f32 %v369, %v444
    %v475 = vadd.f32 %v375, %v449
    %v476 = vsub.f32 %v474, %v458
    %v477 = vsub.f32 %v475, %v459
    %v478 = vadd.f32 %v476, 0.0009
    %v479 = vadd.f32 %v477, 0.0009
    %v480 = vmul.f32 %v472, %v478
    %v481 = vmul.f32 %v473, %v479
    %v482 = vrcp.pop %v480
    %v483 = vrcp.pop %v481
    %v484 = vmul.f32 %v480, %v482
    %v485 = vmul.f32 %v481, %v483
    %v486 = vsub.f32 2.0, %v484
    %v487 = vsub.f32 2.0, %v485
    %v488 = vmul.f32 %v482, %v486
    %v489 = vmul.f32 %v483, %v487
    %v490 = vmul.f32 %v470, %v488
    %v491 = vmul.f32 %v471, %v489
    %v492 = vadd.f32 %v490, %v491
    %493 = vst [vmem:[#allocation10] sm:$0xff] %v492
    // Predicated region
    $region34: #{tpu_custom_call.1} parent=1 // pred_check
      _
    $region35: #{tpu_custom_call.1} parent=1 // pred_check_branch
      %495 = sbr.rel (0) target = $region37
    $region36: #{tpu_custom_call.1} parent=1 // pred_region
      %s497 = ssub.s32 128, 128
      %498 = vsyncadd [#allocation4], %s497
      %s500 = sshll.u32 [#allocation10], 4
      %s501 = int_to_ptr.vmem [resolvable:$true] %s500
      %503 = dma.vmem_to_hbm [thread:$0]  %s501, 128, %s4, [#allocation4]
    $region37: #{tpu_custom_call.1} parent=1 // pred_fallthru
      _
    // Predicated region
    $region38: #{tpu_custom_call.1} parent=1 // pred_check
      _
    $region39: #{tpu_custom_call.1} parent=1 // pred_check_branch
      %505 = sbr.rel (0) target = $region41
    $region40: #{tpu_custom_call.1} parent=1 // pred_region
      %506 = dma.done [#allocation4], 128
    $region41: #{tpu_custom_call.1} parent=1 // pred_fallthru
      _
    %507 = vsyncpa [#allocation3], 1
    %508 = vsyncpa [#allocation6], 1
    %509 = vsyncpa [#allocation9], 1
    %510 = vsyncpa [#allocation4], 1

</llo_original>
